<compile_context>
chip_gen: v6e
topology: v6e:2x2x1
jax: 0.10.0
libtpu: 0.0.40
codegen_flags: <defaults>
</compile_context>

<pallas_src>
import functools

import jax
import jax.numpy as jnp
from jax.experimental import pallas as pl
from jax.experimental.pallas import tpu as pltpu

STATE_DIM = 14
ACTION_DIM = 3
IN_DIM = STATE_DIM + ACTION_DIM   # 17
HID_DIM = 17
OUT_DIM = 14
LEAKY_SLOPE = 0.01                # nn.LeakyReLU default negative_slope

_DEFAULT_BLOCK_ROWS = 4096        # max batch-tile rows (multiple of 128)
_DEFAULT_MIN_PALLAS_ROWS = 1024   # below this, plain jnp is strictly faster
_LANE = 128
# ~0.35 us per grid step; at ~1 TB/s HBM and ~124 B of activation I/O per row,
# one grid step costs roughly as much as DMA-ing ~2048 rows.
_OVERHEAD_EQUIV_ROWS = 2048


def _round_up(x, m):
    return (x + m - 1) // m * m


def _choose_tile(b, block_rows):
    """Pick (tb, bp): tile rows (multiple of 128, <= block_rows) and padded batch.

    Cost model (in 'row' units): padded rows actually moved through HBM plus a
    per-grid-step overhead term; single-step grids get an extra penalty because
    one v7x TensorCore would sit idle under dimension_semantics=('parallel',).
    """
    block_rows = max(128, _round_up(block_rows, 128))
    best = None
    tb = 128
    while tb <= block_rows:
        bp = _round_up(b, tb)
        steps = bp // tb
        cost = bp + steps * _OVERHEAD_EQUIV_ROWS
        if steps == 1:
            cost += _OVERHEAD_EQUIV_ROWS
        if best is None or cost < best[0]:
            best = (cost, tb, bp)
        tb *= 2
    return best[1], best[2]


def _forward_kernel(s_ref, a_ref, w1s_ref, w1a_ref, b1_ref, w2_ref, b2_ref, o_ref):
    # s_ref: (TB,14), a_ref: (TB,3)
    # w1s_ref: (14,17), w1a_ref: (3,17), b1_ref: (1,17)
    # w2_ref: (17,14), b2_ref: (1,14), o_ref: (TB,14)
    #
    # concat(state, action) @ W1 == state @ W1[:14] + action @ W1[14:]
    h = (jnp.dot(s_ref[...], w1s_ref[...], preferred_element_type=jnp.float32)
         + jnp.dot(a_ref[...], w1a_ref[...], preferred_element_type=jnp.float32)
         + b1_ref[...])
    # LeakyReLU as a single vmax (exact for slope in (0,1)).
    h = jnp.maximum(h, LEAKY_SLOPE * h)
    y = jnp.dot(h, w2_ref[...], preferred_element_type=jnp.float32) + b2_ref[...]
    o_ref[...] = y.astype(o_ref.dtype)


def _mlp_reference(state_features, action_prob, params):
    """Plain-jnp forward (also the small-batch fast path). Same math as kernel."""
    w1, b1, w2, b2 = params
    rep = jnp.concatenate([state_features, action_prob], axis=-1)
    h = jnp.dot(rep, w1, preferred_element_type=jnp.float32) + b1
    h = jnp.maximum(h, LEAKY_SLOPE * h)
    y = jnp.dot(h, w2, preferred_element_type=jnp.float32) + b2
    return y.astype(state_features.dtype)


@functools.partial(jax.jit, static_argnames=("block_rows", "min_pallas_rows"))
def forward_model(state_features, action_prob, params, *,
                  block_rows=_DEFAULT_BLOCK_ROWS,
                  min_pallas_rows=_DEFAULT_MIN_PALLAS_ROWS):
    """Pallas equivalent of ForwardModel.forward.

    state_features: (B,14) or (14,)   f32 (or bf16 for halved activation HBM traffic)
    action_prob:    (B,3)  or (3,)
    returns:        (B,14) or (14,)   in the input dtype
    """
    w1, b1, w2, b2 = params

    squeeze = state_features.ndim == 1
    if squeeze:
        state_features = state_features[None, :]
        action_prob = action_prob[None, :]

    b = state_features.shape[0]

    # Small-batch / single-sample fast path: an XLA dot beats kernel launch +
    # row padding for small b.
    if b < max(1, min_pallas_rows):
        out = _mlp_reference(state_features, action_prob, params)
        return out[0] if squeeze else out

    io_dtype = state_features.dtype
    tb, bp = _choose_tile(b, block_rows)
    if bp != b:
        pad = bp - b
        state_features = jnp.pad(state_features, ((0, pad), (0, 0)))
        action_prob = jnp.pad(action_prob, ((0, pad), (0, 0)))

    # Constant-size weight split (replaces the per-call (B,17) concat).
    w1s = w1[:STATE_DIM, :]
    w1a = w1[STATE_DIM:, :]

    # VMEM footprint uses lane-PADDED blocks: each (tb, <=17) block occupies
    # tb*128*itemsize bytes.  3 I/O arrays double-buffered + f32 intermediates.
    io_bytes = jnp.dtype(io_dtype).itemsize
    vmem_est = 6 * tb * _LANE * io_bytes + 6 * tb * _LANE * 4 + (1 << 20)
    vmem_limit = int(min(max(vmem_est, 32 * 1024 * 1024), 48 * 1024 * 1024))

    cost = pl.CostEstimate(
        flops=2 * bp * (IN_DIM * HID_DIM + HID_DIM * OUT_DIM),
        transcendentals=0,
        bytes_accessed=bp * (STATE_DIM + ACTION_DIM + OUT_DIM) * io_bytes
        + 4 * (IN_DIM * HID_DIM + HID_DIM + HID_DIM * OUT_DIM + OUT_DIM),
    )

    out = pl.pallas_call(
        _forward_kernel,
        out_shape=jax.ShapeDtypeStruct((bp, OUT_DIM), io_dtype),
        grid=(bp // tb,),
        in_specs=[
            pl.BlockSpec((tb, STATE_DIM), lambda i: (i, 0)),        # state tile
            pl.BlockSpec((tb, ACTION_DIM), lambda i: (i, 0)),       # action tile
            pl.BlockSpec((STATE_DIM, HID_DIM), lambda i: (0, 0)),   # W1[:14]  (resident)
            pl.BlockSpec((ACTION_DIM, HID_DIM), lambda i: (0, 0)),  # W1[14:]  (resident)
            pl.BlockSpec((1, HID_DIM), lambda i: (0, 0)),           # b1       (resident)
            pl.BlockSpec((HID_DIM, OUT_DIM), lambda i: (0, 0)),     # W2       (resident)
            pl.BlockSpec((1, OUT_DIM), lambda i: (0, 0)),           # b2       (resident)
        ],
        out_specs=pl.BlockSpec((tb, OUT_DIM), lambda i: (i, 0)),
        compiler_params=pltpu.CompilerParams(
            dimension_semantics=("parallel",),   # split batch across v7x's 2 TCs
            vmem_limit_bytes=vmem_limit,
        ),
        cost_estimate=cost,
    )(
        state_features,
        action_prob,
        w1s,
        w1a,
        b1.reshape(1, HID_DIM),
        w2,
        b2.reshape(1, OUT_DIM),
    )

    out = out[:b]
    if squeeze:
        out = out[0]
    return out


def init_params(key):
    """Deterministic init mirroring the PyTorch module:
    - weights: xavier_uniform_ (bound = sqrt(6/(fan_in+fan_out)))
    - biases:  PyTorch Linear default uniform(-1/sqrt(fan_in), 1/sqrt(fan_in))
    Weights stored transposed as (in, out)."""
    k1, k2, k3, k4 = jax.random.split(key, 4)

    bound1 = (6.0 / (IN_DIM + HID_DIM)) ** 0.5
    w1 = jax.random.uniform(k1, (IN_DIM, HID_DIM), jnp.float32, -bound1, bound1)
    bb1 = 1.0 / (IN_DIM ** 0.5)
    b1 = jax.random.uniform(k2, (HID_DIM,), jnp.float32, -bb1, bb1)

    bound2 = (6.0 / (HID_DIM + OUT_DIM)) ** 0.5
    w2 = jax.random.uniform(k3, (HID_DIM, OUT_DIM), jnp.float32, -bound2, bound2)
    bb2 = 1.0 / (HID_DIM ** 0.5)
    b2 = jax.random.uniform(k4, (OUT_DIM,), jnp.float32, -bb2, bb2)

    return w1, b1, w2, b2


def _reference(state_features, action_prob, params):
    w1, b1, w2, b2 = params
    rep = jnp.concatenate([state_features, action_prob], axis=-1)
    h = rep @ w1 + b1
    h = jnp.where(h >= 0, h, LEAKY_SLOPE * h)
    return h @ w2 + b2


if __name__ == "__main__":
    key = jax.random.PRNGKey(0)
    kp, ks, ka = jax.random.split(key, 3)

    params = init_params(kp)

    # Pallas path (forced via min_pallas_rows=0 so the small test batch still
    # exercises the kernel; _choose_tile picks tb=128 -> 2 grid steps).
    B = 256
    state_b = jax.random.normal(ks, (B, STATE_DIM), jnp.float32)
    action_b = jax.nn.softmax(
        jax.random.normal(ka, (B, ACTION_DIM), jnp.float32), axis=-1)

    out_b = jax.block_until_ready(
        forward_model(state_b, action_b, params, min_pallas_rows=0))
    ref_b = _reference(state_b, action_b, params)
    assert out_b.shape == (B, OUT_DIM)
    assert jnp.allclose(out_b, ref_b, atol=1e-5, rtol=1e-5), (out_b, ref_b)

    # Default small-batch fast path (plain jnp).
    out_small = jax.block_until_ready(forward_model(state_b[:8], action_b[:8], params))
    assert out_small.shape == (8, OUT_DIM)
    assert jnp.allclose(out_small, ref_b[:8], atol=1e-5, rtol=1e-5)

    # Single-sample path (matches ForwardModel.forward's (14,), (3,) signature).
    out_1 = jax.block_until_ready(forward_model(state_b[0], action_b[0], params))
    ref_1 = _reference(state_b[0], action_b[0], params)
    assert out_1.shape == (OUT_DIM,)
    assert jnp.allclose(out_1, ref_1, atol=1e-5, rtol=1e-5), (out_1, ref_1)

    print("KERNEL_OK")
</pallas_src>

<mosaic_0001>
module attributes {stable_mosaic.version = 11 : i64} {
  func.func @_forward_kernel(%arg0: i32, %arg1: memref<128x14xf32, #tpu.memory_space<vmem>>, %arg2: memref<128x3xf32, #tpu.memory_space<vmem>>, %arg3: memref<14x17xf32, #tpu.memory_space<vmem>>, %arg4: memref<3x17xf32, #tpu.memory_space<vmem>>, %arg5: memref<1x17xf32, #tpu.memory_space<vmem>>, %arg6: memref<17x14xf32, #tpu.memory_space<vmem>>, %arg7: memref<1x14xf32, #tpu.memory_space<vmem>>, %arg8: memref<128x14xf32, #tpu.memory_space<vmem>>) attributes {dimension_semantics = [#tpu.dimension_semantics<parallel>], iteration_bounds = array<i64: 2>, scalar_prefetch = 0 : i64, scratch_operands = 0 : i64, tpu.core_type = #tpu.core_type<tc>, window_params = [{transform_indices = @transform_0, window_bounds = array<i64: 128, 14>}, {transform_indices = @transform_1, window_bounds = array<i64: 128, 3>}, {pipeline_mode = #tpu.pipeline_mode<synchronous>, transform_indices = @transform_2, window_bounds = array<i64: 14, 17>}, {pipeline_mode = #tpu.pipeline_mode<synchronous>, transform_indices = @transform_3, window_bounds = array<i64: 3, 17>}, {pipeline_mode = #tpu.pipeline_mode<synchronous>, transform_indices = @transform_4, window_bounds = array<i64: 1, 17>}, {pipeline_mode = #tpu.pipeline_mode<synchronous>, transform_indices = @transform_5, window_bounds = array<i64: 17, 14>}, {pipeline_mode = #tpu.pipeline_mode<synchronous>, transform_indices = @transform_6, window_bounds = array<i64: 1, 14>}, {transform_indices = @transform_7, window_bounds = array<i64: 128, 14>}]} {
    %c0 = arith.constant 0 : index
    %c0_0 = arith.constant 0 : index
    %0 = vector.load %arg1[%c0, %c0_0] : memref<128x14xf32, #tpu.memory_space<vmem>>, vector<128x14xf32>
    %c0_1 = arith.constant 0 : index
    %c0_2 = arith.constant 0 : index
    %1 = vector.load %arg3[%c0_1, %c0_2] : memref<14x17xf32, #tpu.memory_space<vmem>>, vector<14x17xf32>
    %cst = arith.constant dense<0.000000e+00> : vector<128x17xf32>
    %2 = tpu.matmul %0, %1, %cst {dimension_numbers = #tpu.dot_dimension_numbers<[1], [0], [0], [1], [0, 0, 1, 1], [], []>} : vector<128x14xf32>, vector<14x17xf32>, vector<128x17xf32> -> vector<128x17xf32>
    %c0_3 = arith.constant 0 : index
    %c0_4 = arith.constant 0 : index
    %3 = vector.load %arg2[%c0_3, %c0_4] : memref<128x3xf32, #tpu.memory_space<vmem>>, vector<128x3xf32>
    %c0_5 = arith.constant 0 : index
    %c0_6 = arith.constant 0 : index
    %4 = vector.load %arg4[%c0_5, %c0_6] : memref<3x17xf32, #tpu.memory_space<vmem>>, vector<3x17xf32>
    %cst_7 = arith.constant dense<0.000000e+00> : vector<128x17xf32>
    %5 = tpu.matmul %3, %4, %cst_7 {dimension_numbers = #tpu.dot_dimension_numbers<[1], [0], [0], [1], [0, 0, 1, 1], [], []>} : vector<128x3xf32>, vector<3x17xf32>, vector<128x17xf32> -> vector<128x17xf32>
    %6 = arith.addf %2, %5 : vector<128x17xf32>
    %c0_8 = arith.constant 0 : index
    %c0_9 = arith.constant 0 : index
    %7 = vector.load %arg5[%c0_8, %c0_9] : memref<1x17xf32, #tpu.memory_space<vmem>>, vector<1x17xf32>
    %8 = vector.broadcast %7 : vector<1x17xf32> to vector<128x17xf32>
    %9 = arith.addf %6, %8 : vector<128x17xf32>
    %cst_10 = arith.constant 0.00999999977 : f32
    %10 = vector.broadcast %cst_10 : f32 to vector<128x17xf32>
    %11 = arith.mulf %10, %9 : vector<128x17xf32>
    %12 = arith.maximumf %9, %11 : vector<128x17xf32>
    %c0_11 = arith.constant 0 : index
    %c0_12 = arith.constant 0 : index
    %13 = vector.load %arg6[%c0_11, %c0_12] : memref<17x14xf32, #tpu.memory_space<vmem>>, vector<17x14xf32>
    %cst_13 = arith.constant dense<0.000000e+00> : vector<128x14xf32>
    %14 = tpu.matmul %12, %13, %cst_13 {dimension_numbers = #tpu.dot_dimension_numbers<[1], [0], [0], [1], [0, 0, 1, 1], [], []>} : vector<128x17xf32>, vector<17x14xf32>, vector<128x14xf32> -> vector<128x14xf32>
    %c0_14 = arith.constant 0 : index
    %c0_15 = arith.constant 0 : index
    %15 = vector.load %arg7[%c0_14, %c0_15] : memref<1x14xf32, #tpu.memory_space<vmem>>, vector<1x14xf32>
    %16 = vector.broadcast %15 : vector<1x14xf32> to vector<128x14xf32>
    %17 = arith.addf %14, %16 : vector<128x14xf32>
    %c0_16 = arith.constant 0 : index
    %c0_17 = arith.constant 0 : index
    %18 = vector.load %arg8[%c0_16, %c0_17] : memref<128x14xf32, #tpu.memory_space<vmem>>, vector<128x14xf32>
    tpu.vector_store %arg8[%c0_16, %c0_17], %17 {strides = array<i32>} : memref<128x14xf32, #tpu.memory_space<vmem>>, vector<128x14xf32>,
    return
  }
  func.func @transform_0(%arg0: i32) -> (i32, i32) {
    %c0_i32 = arith.constant 0 : i32
    %c0_i32_0 = arith.constant 0 : i32
    return %arg0, %c0_i32 : i32, i32
  }
  func.func @transform_1(%arg0: i32) -> (i32, i32) {
    %c0_i32 = arith.constant 0 : i32
    %c0_i32_0 = arith.constant 0 : i32
    return %arg0, %c0_i32 : i32, i32
  }
  func.func @transform_2(%arg0: i32) -> (i32, i32) {
    %c0_i32 = arith.constant 0 : i32
    %c0_i32_0 = arith.constant 0 : i32
    %c0_i32_1 = arith.constant 0 : i32
    return %c0_i32, %c0_i32_0 : i32, i32
  }
  func.func @transform_3(%arg0: i32) -> (i32, i32) {
    %c0_i32 = arith.constant 0 : i32
    %c0_i32_0 = arith.constant 0 : i32
    %c0_i32_1 = arith.constant 0 : i32
    return %c0_i32, %c0_i32_0 : i32, i32
  }
  func.func @transform_4(%arg0: i32) -> (i32, i32) {
    %c0_i32 = arith.constant 0 : i32
    %c0_i32_0 = arith.constant 0 : i32
    %c0_i32_1 = arith.constant 0 : i32
    return %c0_i32, %c0_i32_0 : i32, i32
  }
  func.func @transform_5(%arg0: i32) -> (i32, i32) {
    %c0_i32 = arith.constant 0 : i32
    %c0_i32_0 = arith.constant 0 : i32
    %c0_i32_1 = arith.constant 0 : i32
    return %c0_i32, %c0_i32_0 : i32, i32
  }
  func.func @transform_6(%arg0: i32) -> (i32, i32) {
    %c0_i32 = arith.constant 0 : i32
    %c0_i32_0 = arith.constant 0 : i32
    %c0_i32_1 = arith.constant 0 : i32
    return %c0_i32, %c0_i32_0 : i32, i32
  }
  func.func @transform_7(%arg0: i32) -> (i32, i32) {
    %c0_i32 = arith.constant 0 : i32
    %c0_i32_0 = arith.constant 0 : i32
    return %arg0, %c0_i32 : i32, i32
  }
}

</mosaic_0001>

<llo_original>
// kernel: forward_model.1
$region0: #{forward_model.1}
  #allocation0 [shape = 'u32[]', space=smem, size = 0x4, offset = 0x4, fixed_abs, tag = 'smem constant byte address 0x4 - core index']
  #allocation1 [shape = 'u32[144,128]{1,0:T(1,128)}', space=vmem, size = 0x12000, scoped, tag = 'internal scratch']
  %s0 = inlined_call_operand.vmem [shape: f32[256,14], index: 0, kind: input, shape index: {}]
  %s1 = inlined_call_operand.vmem [shape: f32[256,3], index: 1, kind: input, shape index: {}]
  %s2 = inlined_call_operand.vmem [shape: f32[14,17], index: 2, kind: input, shape index: {}]
  %s3 = inlined_call_operand.vmem [shape: f32[3,17], index: 3, kind: input, shape index: {}]
  %s4 = inlined_call_operand.vmem [shape: f32[1,17], index: 4, kind: input, shape index: {}]
  %s5 = inlined_call_operand.vmem [shape: f32[17,14], index: 5, kind: input, shape index: {}]
  %s6 = inlined_call_operand.vmem [shape: f32[1,14], index: 6, kind: input, shape index: {}]
  %s7 = inlined_call_operand.vmem [shape: f32[256,14], index: 7, kind: output, shape index: {}]
  %s8 = sld [smem:[#allocation0]]
  $region61: #{forward_model.1} parent=0
    _
  %s10 = ssub.s32 1, %s8
  %s11 = scalar_select 0, %s10, %s8
  loop: start=0, step=1, limit=4
  $region2: #{forward_model.1} parent=0 // loop_pre_header
    _
  $region3: #{forward_model.1} parent=0 // loop_header
    %s13 = sphi 0, %s17
    %p14 = scmp.ge.s32.totalorder %s13, 4
    %s23 = sphi 0, %s25
    %s26 = sphi 0, %s23
    %s27 = sphi 0, %s26
    %s43 = sphi 0, %s27
    %s49 = sphi 0, %s51
    %s52 = sphi 0, %s49
    %s53 = sphi 0, %s52
    %s69 = sphi 0, %s53
    %s73 = sphi 0, %s73
    %s75 = sphi 0, %s73
    %s76 = sphi 0, %s75
    %s90 = sphi 0, %s76
    %s94 = sphi 0, %s94
    %s96 = sphi 0, %s94
    %s97 = sphi 0, %s96
    %s111 = sphi 0, %s97
    %s115 = sphi 0, %s115
    %s117 = sphi 0, %s115
    %s118 = sphi 0, %s117
    %s132 = sphi 0, %s118
    %s136 = sphi 0, %s136
    %s138 = sphi 0, %s136
    %s139 = sphi 0, %s138
    %s153 = sphi 0, %s139
    %s157 = sphi 0, %s157
    %s159 = sphi 0, %s157
    %s160 = sphi 0, %s159
    %s174 = sphi 0, %s160
    %s180 = sphi 0, %s182
    %s183 = sphi 0, %s180
    %s184 = sphi 0, %s183
    %s200 = sphi 0, %s184
  $region4: #{forward_model.1} parent=0 // loop_header_branch
    %16 = sbr.rel (%p14) target = $region8
  $region5: #{forward_model.1} parent=0 // loop_body
    %s18 = ssub.s32 %s13, 1
    %s19 = ssub.s32 %s13, 2
    %s20 = sadd.s32 %s13, 1
    %s21 = ssub.s32 %s13, %s20
    %p22 = scmp.eq.s32.totalorder %s21, 0
    %s24 = sadd.s32 %s23, 1
    %s25 = scalar_select %p22, %s23, %s24
    %p28 = pneg %p22
    %p29 = scmp.eq.s32.totalorder %s13, 1
    %p30 = por %p28, %p29
    %p31 = scmp.ne.s32.totalorder %s23, %s26
    %p32 = scmp.eq.s32.totalorder %s13, 0
    %p33 = por %p31, %p32
    %p34 = scmp.ne.s32.totalorder %s23, %s26
    %p35 = scmp.eq.s32.totalorder %s18, 1
    %p36 = por %p34, %p35
    %p37 = scmp.ne.s32.totalorder %s26, %s27
    %p38 = scmp.eq.s32.totalorder %s18, 0
    %p39 = por %p37, %p38
    %p40 = scmp.ne.s32.totalorder %s26, %s27
    %p41 = scmp.eq.s32.totalorder %s19, 1
    %p42 = por %p40, %p41
    %p44 = scmp.ne.s32.totalorder %s27, %s43
    %p45 = scmp.eq.s32.totalorder %s19, 0
    %p46 = por %p44, %p45
    %s47 = ssub.s32 %s13, %s20
    %p48 = scmp.eq.s32.totalorder %s47, 0
    %s50 = sadd.s32 %s49, 1
    %s51 = scalar_select %p48, %s49, %s50
    %p54 = pneg %p48
    %p55 = scmp.eq.s32.totalorder %s13, 1
    %p56 = por %p54, %p55
    %p57 = scmp.ne.s32.totalorder %s49, %s52
    %p58 = scmp.eq.s32.totalorder %s13, 0
    %p59 = por %p57, %p58
    %p60 = scmp.ne.s32.totalorder %s49, %s52
    %p61 = scmp.eq.s32.totalorder %s18, 1
    %p62 = por %p60, %p61
    %p63 = scmp.ne.s32.totalorder %s52, %s53
    %p64 = scmp.eq.s32.totalorder %s18, 0
    %p65 = por %p63, %p64
    %p66 = scmp.ne.s32.totalorder %s52, %s53
    %p67 = scmp.eq.s32.totalorder %s19, 1
    %p68 = por %p66, %p67
    %p70 = scmp.ne.s32.totalorder %s53, %s69
    %p71 = scmp.eq.s32.totalorder %s19, 0
    %p72 = por %p70, %p71
    %s74 = sadd.s32 %s73, 1
    %p77 = scmp.eq.s32.totalorder %s13, 1
    %p78 = scmp.ne.s32.totalorder %s73, %s75
    %p79 = scmp.eq.s32.totalorder %s13, 0
    %p80 = por %p78, %p79
    %p81 = scmp.ne.s32.totalorder %s73, %s75
    %p82 = scmp.eq.s32.totalorder %s18, 1
    %p83 = por %p81, %p82
    %p84 = scmp.ne.s32.totalorder %s75, %s76
    %p85 = scmp.eq.s32.totalorder %s18, 0
    %p86 = por %p84, %p85
    %p87 = scmp.ne.s32.totalorder %s75, %s76
    %p88 = scmp.eq.s32.totalorder %s19, 1
    %p89 = por %p87, %p88
    %p91 = scmp.ne.s32.totalorder %s76, %s90
    %p92 = scmp.eq.s32.totalorder %s19, 0
    %p93 = por %p91, %p92
    %s95 = sadd.s32 %s94, 1
    %p98 = scmp.eq.s32.totalorder %s13, 1
    %p99 = scmp.ne.s32.totalorder %s94, %s96
    %p100 = scmp.eq.s32.totalorder %s13, 0
    %p101 = por %p99, %p100
    %p102 = scmp.ne.s32.totalorder %s94, %s96
    %p103 = scmp.eq.s32.totalorder %s18, 1
    %p104 = por %p102, %p103
    %p105 = scmp.ne.s32.totalorder %s96, %s97
    %p106 = scmp.eq.s32.totalorder %s18, 0
    %p107 = por %p105, %p106
    %p108 = scmp.ne.s32.totalorder %s96, %s97
    %p109 = scmp.eq.s32.totalorder %s19, 1
    %p110 = por %p108, %p109
    %p112 = scmp.ne.s32.totalorder %s97, %s111
    %p113 = scmp.eq.s32.totalorder %s19, 0
    %p114 = por %p112, %p113
    %s116 = sadd.s32 %s115, 1
    %p119 = scmp.eq.s32.totalorder %s13, 1
    %p120 = scmp.ne.s32.totalorder %s115, %s117
    %p121 = scmp.eq.s32.totalorder %s13, 0
    %p122 = por %p120, %p121
    %p123 = scmp.ne.s32.totalorder %s115, %s117
    %p124 = scmp.eq.s32.totalorder %s18, 1
    %p125 = por %p123, %p124
    %p126 = scmp.ne.s32.totalorder %s117, %s118
    %p127 = scmp.eq.s32.totalorder %s18, 0
    %p128 = por %p126, %p127
    %p129 = scmp.ne.s32.totalorder %s117, %s118
    %p130 = scmp.eq.s32.totalorder %s19, 1
    %p131 = por %p129, %p130
    %p133 = scmp.ne.s32.totalorder %s118, %s132
    %p134 = scmp.eq.s32.totalorder %s19, 0
    %p135 = por %p133, %p134
    %s137 = sadd.s32 %s136, 1
    %p140 = scmp.eq.s32.totalorder %s13, 1
    %p141 = scmp.ne.s32.totalorder %s136, %s138
    %p142 = scmp.eq.s32.totalorder %s13, 0
    %p143 = por %p141, %p142
    %p144 = scmp.ne.s32.totalorder %s136, %s138
    %p145 = scmp.eq.s32.totalorder %s18, 1
    %p146 = por %p144, %p145
    %p147 = scmp.ne.s32.totalorder %s138, %s139
    %p148 = scmp.eq.s32.totalorder %s18, 0
    %p149 = por %p147, %p148
    %p150 = scmp.ne.s32.totalorder %s138, %s139
    %p151 = scmp.eq.s32.totalorder %s19, 1
    %p152 = por %p150, %p151
    %p154 = scmp.ne.s32.totalorder %s139, %s153
    %p155 = scmp.eq.s32.totalorder %s19, 0
    %p156 = por %p154, %p155
    %s158 = sadd.s32 %s157, 1
    %p161 = scmp.eq.s32.totalorder %s13, 1
    %p162 = scmp.ne.s32.totalorder %s157, %s159
    %p163 = scmp.eq.s32.totalorder %s13, 0
    %p164 = por %p162, %p163
    %p165 = scmp.ne.s32.totalorder %s157, %s159
    %p166 = scmp.eq.s32.totalorder %s18, 1
    %p167 = por %p165, %p166
    %p168 = scmp.ne.s32.totalorder %s159, %s160
    %p169 = scmp.eq.s32.totalorder %s18, 0
    %p170 = por %p168, %p169
    %p171 = scmp.ne.s32.totalorder %s159, %s160
    %p172 = scmp.eq.s32.totalorder %s19, 1
    %p173 = por %p171, %p172
    %p175 = scmp.ne.s32.totalorder %s160, %s174
    %p176 = scmp.eq.s32.totalorder %s19, 0
    %p177 = por %p175, %p176
    %s178 = ssub.s32 %s13, %s20
    %p179 = scmp.eq.s32.totalorder %s178, 0
    %s181 = sadd.s32 %s180, 1
    %s182 = scalar_select %p179, %s180, %s181
    %p185 = pneg %p179
    %p186 = scmp.eq.s32.totalorder %s13, 1
    %p187 = por %p185, %p186
    %p188 = scmp.ne.s32.totalorder %s180, %s183
    %p189 = scmp.eq.s32.totalorder %s13, 0
    %p190 = por %p188, %p189
    %p191 = scmp.ne.s32.totalorder %s180, %s183
    %p192 = scmp.eq.s32.totalorder %s18, 1
    %p193 = por %p191, %p192
    %p194 = scmp.ne.s32.totalorder %s183, %s184
    %p195 = scmp.eq.s32.totalorder %s18, 0
    %p196 = por %p194, %p195
    %p197 = scmp.ne.s32.totalorder %s183, %s184
    %p198 = scmp.eq.s32.totalorder %s19, 1
    %p199 = por %p197, %p198
    %p201 = scmp.ne.s32.totalorder %s184, %s200
    %p202 = scmp.eq.s32.totalorder %s19, 0
    %p203 = por %p201, %p202
    %p204 = scmp.le.s32.totalorder 1, %s13
    %p205 = scmp.lt.s32.totalorder %s13, 3
    %p206 = pnand %p204, %p205
    %p207 = pneg %p206
    // Predicated region
    $region9: #{forward_model.1} parent=5 // pred_check
      _
    $region10: #{forward_model.1} parent=5 // pred_check_branch
      %209 = sbr.rel (%p206) target = $region12
    $region11: #{forward_model.1} parent=5 // pred_region
      %s210 = ssub.s32 %s13, 1
      // Predicated region
      $region13: #{forward_model.1} parent=11 // pred_check
        %p211 = pneg %p86
      $region14: #{forward_model.1} parent=11 // pred_check_branch
        %213 = sbr.rel (%p211) target = $region16
      $region15: #{forward_model.1} parent=11 // pred_region
        _
      $region16: #{forward_model.1} parent=11 // pred_fallthru
        _
      // Predicated region
      $region17: #{forward_model.1} parent=11 // pred_check
        %p214 = pneg %p107
      $region18: #{forward_model.1} parent=11 // pred_check_branch
        %216 = sbr.rel (%p214) target = $region20
      $region19: #{forward_model.1} parent=11 // pred_region
        _
      $region20: #{forward_model.1} parent=11 // pred_fallthru
        _
      // Predicated region
      $region21: #{forward_model.1} parent=11 // pred_check
        %p217 = pneg %p128
      $region22: #{forward_model.1} parent=11 // pred_check_branch
        %219 = sbr.rel (%p217) target = $region24
      $region23: #{forward_model.1} parent=11 // pred_region
        _
      $region24: #{forward_model.1} parent=11 // pred_fallthru
        _
      // Predicated region
      $region25: #{forward_model.1} parent=11 // pred_check
        %p220 = pneg %p149
      $region26: #{forward_model.1} parent=11 // pred_check_branch
        %222 = sbr.rel (%p220) target = $region28
      $region27: #{forward_model.1} parent=11 // pred_region
        _
      $region28: #{forward_model.1} parent=11 // pred_fallthru
        _
      // Predicated region
      $region29: #{forward_model.1} parent=11 // pred_check
        %p223 = pneg %p170
      $region30: #{forward_model.1} parent=11 // pred_check_branch
        %225 = sbr.rel (%p223) target = $region32
      $region31: #{forward_model.1} parent=11 // pred_region
        _
      $region32: #{forward_model.1} parent=11 // pred_fallthru
        _
    $region12: #{forward_model.1} parent=5 // pred_fallthru
      _
    %p226 = scmp.lt.s32.totalorder %s13, 2
    // Predicated region
    $region33: #{forward_model.1} parent=5 // pred_check
      %p227 = pneg %p226
    $region34: #{forward_model.1} parent=5 // pred_check_branch
      %229 = sbr.rel (%p227) target = $region36
    $region35: #{forward_model.1} parent=5 // pred_region
      // Predicated region
      $region37: #{forward_model.1} parent=35 // pred_check
        %p230 = pneg %p33
      $region38: #{forward_model.1} parent=35 // pred_check_branch
        %232 = sbr.rel (%p230) target = $region40
      $region39: #{forward_model.1} parent=35 // pred_region
        %s233 = smul.u32 16, %s13
        %p234 = scmp.lt.s32.totalorder %s233, 31
        %s235 = scalar_select %p234, %s233, 31
        %s236 = smul.addr %s235, 8
        %s237 = scalar_lea.vmem %s0, %s236
        %s238 = smul.u32 16, %s13
      $region40: #{forward_model.1} parent=35 // pred_fallthru
        _
      // Predicated region
      $region41: #{forward_model.1} parent=35 // pred_check
        %p239 = pneg %p59
      $region42: #{forward_model.1} parent=35 // pred_check_branch
        %241 = sbr.rel (%p239) target = $region44
      $region43: #{forward_model.1} parent=35 // pred_region
        %s242 = smul.u32 16, %s13
        %p243 = scmp.lt.s32.totalorder %s242, 31
        %s244 = scalar_select %p243, %s242, 31
        %s245 = smul.addr %s244, 8
        %s246 = scalar_lea.vmem %s1, %s245
        %s247 = smul.u32 16, %s13
      $region44: #{forward_model.1} parent=35 // pred_fallthru
        _
    $region36: #{forward_model.1} parent=5 // pred_fallthru
      _
    %p248 = scmp.le.s32.totalorder 1, %s13
    %p249 = scmp.lt.s32.totalorder %s13, 3
    %p250 = pnand %p248, %p249
    %p251 = pneg %p250
    // Predicated region
    $region45: #{forward_model.1} parent=5 // pred_check
      _
    $region46: #{forward_model.1} parent=5 // pred_check_branch
      %253 = sbr.rel (%p250) target = $region48
    $region47: #{forward_model.1} parent=5 // pred_region
      %s254 = ssub.s32 %s13, 1
      %s255 = smul.u32 16, %s18
      %p256 = scmp.lt.s32.totalorder %s255, 31
      %s257 = scalar_select %p256, %s255, 31
      %s258 = smul.addr %s257, 8
      %s259 = scalar_lea.vmem %s0, %s258
      %p260 = pneg %p39
      %p261 = pneg %p36
      %s262 = smul.u32 16, %s18
      %p263 = scmp.lt.s32.totalorder %s262, 31
      %s264 = scalar_select %p263, %s262, 31
      %s265 = smul.addr %s264, 8
      %s266 = scalar_lea.vmem %s1, %s265
      %p267 = pneg %p65
      %p268 = pneg %p62
      %p269 = pneg %p86
      %p270 = pneg %p83
      %p271 = pneg %p107
      %p272 = pneg %p104
      %p273 = pneg %p128
      %p274 = pneg %p125
      %p275 = pneg %p149
      %p276 = pneg %p146
      %p277 = pneg %p170
      %p278 = pneg %p167
      %p279 = pneg %p196
      %p280 = pneg %p193
      %s281 = smul.u32 16, %s18
      %p282 = scmp.lt.s32.totalorder %s281, 31
      %s283 = scalar_select %p282, %s281, 31
      %s284 = smul.addr %s283, 8
      %s285 = scalar_lea.vmem %s7, %s284
      %s286 = smul.u32 16, %s18
      %p287 = scmp.lt.s32.totalorder %s286, 31
      %s288 = scalar_select %p287, %s286, 31
      %s289 = smul.addr %s288, 8
      %s290 = scalar_lea.vmem %s0, %s289
      %s291 = smul.u32 16, %s18
      %s292 = smul.u32 16, %s18
      %p293 = scmp.lt.s32.totalorder %s292, 31
      %s294 = scalar_select %p293, %s292, 31
      %s295 = smul.addr %s294, 8
      %s296 = scalar_lea.vmem %s1, %s295
      %s297 = smul.u32 16, %s18
      %s298 = smul.u32 16, %s18
      %p299 = scmp.lt.s32.totalorder %s298, 31
      %s300 = scalar_select %p299, %s298, 31
      %s301 = smul.addr %s300, 8
      %s302 = scalar_lea.vmem %s7, %s301
      %s303 = smul.u32 16, %s18
      %v304 = vld [vmem:[%s290] sm:$0xff]
      %v305 = vld [vmem:[%s290 + $0x8] sm:$0xff]
      %v306 = vld [vmem:[%s290 + $0x10] sm:$0xff]
      %v307 = vld [vmem:[%s290 + $0x18] sm:$0xff]
      %v308 = vld [vmem:[%s290 + $0x20] sm:$0xff]
      %v309 = vld [vmem:[%s290 + $0x28] sm:$0xff]
      %v310 = vld [vmem:[%s290 + $0x30] sm:$0xff]
      %v311 = vld [vmem:[%s290 + $0x38] sm:$0xff]
      %v312 = vld [vmem:[%s290 + $0x40] sm:$0xff]
      %v313 = vld [vmem:[%s290 + $0x48] sm:$0xff]
      %v314 = vld [vmem:[%s290 + $0x50] sm:$0xff]
      %v315 = vld [vmem:[%s290 + $0x58] sm:$0xff]
      %v316 = vld [vmem:[%s290 + $0x60] sm:$0xff]
      %v317 = vld [vmem:[%s290 + $0x68] sm:$0xff]
      %v318 = vld [vmem:[%s290 + $0x70] sm:$0xff]
      %v319 = vld [vmem:[%s290 + $0x78] sm:$0xff]
      %v320 = vld [vmem:[%s2] sm:$0xff]
      %v321 = vld [vmem:[%s2 + $0x8] sm:$0x3f]
      %v322 = vld [vmem:[%s296] sm:$0xff]
      %v323 = vld [vmem:[%s296 + $0x8] sm:$0xff]
      %v324 = vld [vmem:[%s296 + $0x10] sm:$0xff]
      %v325 = vld [vmem:[%s296 + $0x18] sm:$0xff]
      %v326 = vld [vmem:[%s296 + $0x20] sm:$0xff]
      %v327 = vld [vmem:[%s296 + $0x28] sm:$0xff]
      %v328 = vld [vmem:[%s296 + $0x30] sm:$0xff]
      %v329 = vld [vmem:[%s296 + $0x38] sm:$0xff]
      %v330 = vld [vmem:[%s296 + $0x40] sm:$0xff]
      %v331 = vld [vmem:[%s296 + $0x48] sm:$0xff]
      %v332 = vld [vmem:[%s296 + $0x50] sm:$0xff]
      %v333 = vld [vmem:[%s296 + $0x58] sm:$0xff]
      %v334 = vld [vmem:[%s296 + $0x60] sm:$0xff]
      %v335 = vld [vmem:[%s296 + $0x68] sm:$0xff]
      %v336 = vld [vmem:[%s296 + $0x70] sm:$0xff]
      %v337 = vld [vmem:[%s296 + $0x78] sm:$0xff]
      %v338 = vld [vmem:[%s3] sm:$0x7]
      %vm339 = vcmask 23552
      %v341 = vsel %vm339, %v322, 0
      %v344 = vsel %vm339, %v323, 0
      %v347 = vsel %vm339, %v324, 0
      %v350 = vsel %vm339, %v325, 0
      %v353 = vsel %vm339, %v326, 0
      %v356 = vsel %vm339, %v327, 0
      %v359 = vsel %vm339, %v328, 0
      %v362 = vsel %vm339, %v329, 0
      %v365 = vsel %vm339, %v330, 0
      %v368 = vsel %vm339, %v331, 0
      %v371 = vsel %vm339, %v332, 0
      %v374 = vsel %vm339, %v333, 0
      %v377 = vsel %vm339, %v334, 0
      %v380 = vsel %vm339, %v335, 0
      %v383 = vsel %vm339, %v336, 0
      %v386 = vsel %vm339, %v337, 0
      %vm388 = vcmask 1042432
      %v390 = vsel %vm388, %v338, 0
      %392 = vmatprep.subr.mxu0 0.0
      %393 = vmatpush1.msra.mxu0 0.0
      %394 = vmatprep.subr.mxu0 0.0
      %395 = vmatpush1.msra.mxu0 0.0
      %396 = vmatprep.subr.mxu0 0.0
      %397 = vmatpush1.msra.mxu0 0.0
      %398 = vmatprep.subr.mxu0 0.0
      %399 = vmatpush1.msra.mxu0 0.0
      %400 = vmatprep.subr.mxu0 0.0
      %401 = vmatpush1.msra.mxu0 0.0
      %402 = vmatprep.subr.mxu0 0.0
      %403 = vmatpush1.msra.mxu0 0.0
      %404 = vmatprep.subr.mxu0 0.0
      %405 = vmatpush1.msra.mxu0 0.0
      %406 = vmatprep.subr.mxu0 0.0
      %407 = vmatpush1.msra.mxu0 0.0
      %408 = vmatprep.subr.mxu0 0.0
      %409 = vmatpush1.msra.mxu0 0.0
      %410 = vmatprep.subr.mxu0 0.0
      %411 = vmatpush1.msra.mxu0 0.0
      %412 = vmatprep.subr.mxu0 0.0
      %413 = vmatpush1.msra.mxu0 0.0
      %414 = vmatprep.subr.mxu0 0.0
      %415 = vmatpush1.msra.mxu0 0.0
      %416 = vmatprep.subr.mxu0 0.0
      %417 = vmatpush1.msra.mxu0 0.0
      %418 = vmatprep.subr.mxu0 0.0
      %419 = vmatpush1.msra.mxu0 0.0
      %420 = vmatprep.subr.mxu0 0.0
      %421 = vmatpush1.msra.mxu0 0.0
      %422 = vmatprep.subr.mxu0 0.0
      %423 = vmatpush1.msra.mxu0 %v390
      %424 = vmatprep.subr.mxu0 0.0
      %425 = vmatpush2.msra.mxu0 0.0
      %426 = vmatprep.subr.mxu0 0.0
      %427 = vmatpush2.msra.mxu0 0.0
      %428 = vmatprep.subr.mxu0 0.0
      %429 = vmatpush2.msra.mxu0 0.0
      %430 = vmatprep.subr.mxu0 0.0
      %431 = vmatpush2.msra.mxu0 0.0
      %432 = vmatprep.subr.mxu0 0.0
      %433 = vmatpush2.msra.mxu0 0.0
      %434 = vmatprep.subr.mxu0 0.0
      %435 = vmatpush2.msra.mxu0 0.0
      %436 = vmatprep.subr.mxu0 0.0
      %437 = vmatpush2.msra.mxu0 0.0
      %438 = vmatprep.subr.mxu0 0.0
      %439 = vmatpush2.msra.mxu0 0.0
      %440 = vmatprep.subr.mxu0 0.0
      %441 = vmatpush2.msra.mxu0 0.0
      %442 = vmatprep.subr.mxu0 0.0
      %443 = vmatpush2.msra.mxu0 0.0
      %444 = vmatprep.subr.mxu0 0.0
      %445 = vmatpush2.msra.mxu0 0.0
      %446 = vmatprep.subr.mxu0 0.0
      %447 = vmatpush2.msra.mxu0 0.0
      %448 = vmatprep.subr.mxu0 0.0
      %449 = vmatpush2.msra.mxu0 0.0
      %450 = vmatprep.subr.mxu0 0.0
      %451 = vmatpush2.msra.mxu0 0.0
      %452 = vmatprep.subr.mxu0 0.0
      %453 = vmatpush2.msra.mxu0 0.0
      %454 = vmatprep.subr.mxu0 0.0
      %455 = vmatpush2.msra.mxu0 0.0
      %456 = vmatprep.mubr.f32.mxu0 0.0
      %457 = vmatmul.mubr.f32.gmra.mxu0 %v341
      %v458 = vpop.f32.mrf.mxu0
      %v459 = vadd.f32 0.0, %v458
      %v460 = vpop.f32.mrf.mxu0
      %461 = vmatprep.mubr.f32.mxu0 0.0
      %462 = vmatmul.mubr.f32.gmra.mxu0 %v344
      %v463 = vpop.f32.mrf.mxu0
      %v464 = vadd.f32 0.0, %v463
      %v465 = vpop.f32.mrf.mxu0
      %466 = vmatprep.mubr.f32.mxu0 0.0
      %467 = vmatmul.mubr.f32.gmra.mxu0 %v347
      %v468 = vpop.f32.mrf.mxu0
      %v469 = vadd.f32 0.0, %v468
      %v470 = vpop.f32.mrf.mxu0
      %471 = vmatprep.mubr.f32.mxu0 0.0
      %472 = vmatmul.mubr.f32.gmra.mxu0 %v350
      %v473 = vpop.f32.mrf.mxu0
      %v474 = vadd.f32 0.0, %v473
      %v475 = vpop.f32.mrf.mxu0
      %476 = vmatprep.mubr.f32.mxu0 0.0
      %477 = vmatmul.mubr.f32.gmra.mxu0 %v353
      %v478 = vpop.f32.mrf.mxu0
      %v479 = vadd.f32 0.0, %v478
      %v480 = vpop.f32.mrf.mxu0
      %481 = vmatprep.mubr.f32.mxu0 0.0
      %482 = vmatmul.mubr.f32.gmra.mxu0 %v356
      %v483 = vpop.f32.mrf.mxu0
      %v484 = vadd.f32 0.0, %v483
      %v485 = vpop.f32.mrf.mxu0
      %486 = vmatprep.mubr.f32.mxu0 0.0
      %487 = vmatmul.mubr.f32.gmra.mxu0 %v359
      %v488 = vpop.f32.mrf.mxu0
      %v489 = vadd.f32 0.0, %v488
      %v490 = vpop.f32.mrf.mxu0
      %491 = vmatprep.mubr.f32.mxu0 0.0
      %492 = vmatmul.mubr.f32.gmra.mxu0 %v362
      %v493 = vpop.f32.mrf.mxu0
      %v494 = vadd.f32 0.0, %v493
      %v495 = vpop.f32.mrf.mxu0
      %496 = vmatprep.mubr.f32.mxu0 0.0
      %497 = vmatmul.mubr.f32.gmra.mxu0 %v365
      %v498 = vpop.f32.mrf.mxu0
      %v499 = vadd.f32 0.0, %v498
      %v500 = vpop.f32.mrf.mxu0
      %501 = vmatprep.mubr.f32.mxu0 0.0
      %502 = vmatmul.mubr.f32.gmra.mxu0 %v368
      %v503 = vpop.f32.mrf.mxu0
      %v504 = vadd.f32 0.0, %v503
      %v505 = vpop.f32.mrf.mxu0
      %506 = vmatprep.mubr.f32.mxu0 0.0
      %507 = vmatmul.mubr.f32.gmra.mxu0 %v371
      %v508 = vpop.f32.mrf.mxu0
      %v509 = vadd.f32 0.0, %v508
      %v510 = vpop.f32.mrf.mxu0
      %511 = vmatprep.mubr.f32.mxu0 0.0
      %512 = vmatmul.mubr.f32.gmra.mxu0 %v374
      %v513 = vpop.f32.mrf.mxu0
      %v514 = vadd.f32 0.0, %v513
      %v515 = vpop.f32.mrf.mxu0
      %516 = vmatprep.mubr.f32.mxu0 0.0
      %517 = vmatmul.mubr.f32.gmra.mxu0 %v377
      %v518 = vpop.f32.mrf.mxu0
      %v519 = vadd.f32 0.0, %v518
      %v520 = vpop.f32.mrf.mxu0
      %521 = vmatprep.mubr.f32.mxu0 0.0
      %522 = vmatmul.mubr.f32.gmra.mxu0 %v380
      %v523 = vpop.f32.mrf.mxu0
      %v524 = vadd.f32 0.0, %v523
      %v525 = vpop.f32.mrf.mxu0
      %526 = vmatprep.mubr.f32.mxu0 0.0
      %527 = vmatmul.mubr.f32.gmra.mxu0 %v383
      %v528 = vpop.f32.mrf.mxu0
      %v529 = vadd.f32 0.0, %v528
      %v530 = vpop.f32.mrf.mxu0
      %531 = vmatprep.mubr.f32.mxu0 0.0
      %532 = vmatmul.mubr.f32.gmra.mxu0 %v386
      %v533 = vpop.f32.mrf.mxu0
      %v534 = vadd.f32 0.0, %v533
      %v535 = vpop.f32.mrf.mxu0
      %536 = vdwg.mxu0
      %vm537 = vcmask 113664
      %v539 = vsel %vm537, %v304, 0
      %v542 = vsel %vm537, %v305, 0
      %v545 = vsel %vm537, %v306, 0
      %v548 = vsel %vm537, %v307, 0
      %v551 = vsel %vm537, %v308, 0
      %v554 = vsel %vm537, %v309, 0
      %v557 = vsel %vm537, %v310, 0
      %v560 = vsel %vm537, %v311, 0
      %v563 = vsel %vm537, %v312, 0
      %v566 = vsel %vm537, %v313, 0
      %v569 = vsel %vm537, %v314, 0
      %v572 = vsel %vm537, %v315, 0
      %v575 = vsel %vm537, %v316, 0
      %v578 = vsel %vm537, %v317, 0
      %v581 = vsel %vm537, %v318, 0
      %v584 = vsel %vm537, %v319, 0
      %vm586 = vcmask 1045504
      %v588 = vsel %vm586, %v321, 0
      %590 = vmatprep.subr.mxu0 0.0
      %591 = vmatpush1.msra.mxu0 0.0
      %592 = vmatprep.subr.mxu0 0.0
      %593 = vmatpush1.msra.mxu0 0.0
      %594 = vmatprep.subr.mxu0 0.0
      %595 = vmatpush1.msra.mxu0 0.0
      %596 = vmatprep.subr.mxu0 0.0
      %597 = vmatpush1.msra.mxu0 0.0
      %598 = vmatprep.subr.mxu0 0.0
      %599 = vmatpush1.msra.mxu0 0.0
      %600 = vmatprep.subr.mxu0 0.0
      %601 = vmatpush1.msra.mxu0 0.0
      %602 = vmatprep.subr.mxu0 0.0
      %603 = vmatpush1.msra.mxu0 0.0
      %604 = vmatprep.subr.mxu0 0.0
      %605 = vmatpush1.msra.mxu0 0.0
      %606 = vmatprep.subr.mxu0 0.0
      %607 = vmatpush1.msra.mxu0 0.0
      %608 = vmatprep.subr.mxu0 0.0
      %609 = vmatpush1.msra.mxu0 0.0
      %610 = vmatprep.subr.mxu0 0.0
      %611 = vmatpush1.msra.mxu0 0.0
      %612 = vmatprep.subr.mxu0 0.0
      %613 = vmatpush1.msra.mxu0 0.0
      %614 = vmatprep.subr.mxu0 0.0
      %615 = vmatpush1.msra.mxu0 0.0
      %616 = vmatprep.subr.mxu0 0.0
      %617 = vmatpush1.msra.mxu0 0.0
      %618 = vmatprep.subr.mxu0 0.0
      %619 = vmatpush1.msra.mxu0 %v588
      %620 = vmatprep.subr.mxu0 0.0
      %621 = vmatpush1.msra.mxu0 %v320
      %622 = vmatprep.subr.mxu0 0.0
      %623 = vmatpush2.msra.mxu0 0.0
      %624 = vmatprep.subr.mxu0 0.0
      %625 = vmatpush2.msra.mxu0 0.0
      %626 = vmatprep.subr.mxu0 0.0
      %627 = vmatpush2.msra.mxu0 0.0
      %628 = vmatprep.subr.mxu0 0.0
      %629 = vmatpush2.msra.mxu0 0.0
      %630 = vmatprep.subr.mxu0 0.0
      %631 = vmatpush2.msra.mxu0 0.0
      %632 = vmatprep.subr.mxu0 0.0
      %633 = vmatpush2.msra.mxu0 0.0
      %634 = vmatprep.subr.mxu0 0.0
      %635 = vmatpush2.msra.mxu0 0.0
      %636 = vmatprep.subr.mxu0 0.0
      %637 = vmatpush2.msra.mxu0 0.0
      %638 = vmatprep.subr.mxu0 0.0
      %639 = vmatpush2.msra.mxu0 0.0
      %640 = vmatprep.subr.mxu0 0.0
      %641 = vmatpush2.msra.mxu0 0.0
      %642 = vmatprep.subr.mxu0 0.0
      %643 = vmatpush2.msra.mxu0 0.0
      %644 = vmatprep.subr.mxu0 0.0
      %645 = vmatpush2.msra.mxu0 0.0
      %646 = vmatprep.subr.mxu0 0.0
      %647 = vmatpush2.msra.mxu0 0.0
      %648 = vmatprep.subr.mxu0 0.0
      %649 = vmatpush2.msra.mxu0 0.0
      %650 = vmatprep.subr.mxu0 0.0
      %651 = vmatpush2.msra.mxu0 0.0
      %652 = vmatprep.subr.mxu0 0.0
      %653 = vmatpush2.msra.mxu0 0.0
      %654 = vmatprep.mubr.f32.mxu0 0.0
      %655 = vmatmul.mubr.f32.gmra.mxu0 %v539
      %v656 = vpop.f32.mrf.mxu0
      %v657 = vadd.f32 %v459, %v656
      %v658 = vpop.f32.mrf.mxu0
      %659 = vmatprep.mubr.f32.mxu0 0.0
      %660 = vmatmul.mubr.f32.gmra.mxu0 %v542
      %v661 = vpop.f32.mrf.mxu0
      %v662 = vadd.f32 %v464, %v661
      %v663 = vpop.f32.mrf.mxu0
      %664 = vmatprep.mubr.f32.mxu0 0.0
      %665 = vmatmul.mubr.f32.gmra.mxu0 %v545
      %v666 = vpop.f32.mrf.mxu0
      %v667 = vadd.f32 %v469, %v666
      %v668 = vpop.f32.mrf.mxu0
      %669 = vmatprep.mubr.f32.mxu0 0.0
      %670 = vmatmul.mubr.f32.gmra.mxu0 %v548
      %v671 = vpop.f32.mrf.mxu0
      %v672 = vadd.f32 %v474, %v671
      %v673 = vpop.f32.mrf.mxu0
      %674 = vmatprep.mubr.f32.mxu0 0.0
      %675 = vmatmul.mubr.f32.gmra.mxu0 %v551
      %v676 = vpop.f32.mrf.mxu0
      %v677 = vadd.f32 %v479, %v676
      %v678 = vpop.f32.mrf.mxu0
      %679 = vmatprep.mubr.f32.mxu0 0.0
      %680 = vmatmul.mubr.f32.gmra.mxu0 %v554
      %v681 = vpop.f32.mrf.mxu0
      %v682 = vadd.f32 %v484, %v681
      %v683 = vpop.f32.mrf.mxu0
      %684 = vmatprep.mubr.f32.mxu0 0.0
      %685 = vmatmul.mubr.f32.gmra.mxu0 %v557
      %v686 = vpop.f32.mrf.mxu0
      %v687 = vadd.f32 %v489, %v686
      %v688 = vpop.f32.mrf.mxu0
      %689 = vmatprep.mubr.f32.mxu0 0.0
      %690 = vmatmul.mubr.f32.gmra.mxu0 %v560
      %v691 = vpop.f32.mrf.mxu0
      %v692 = vadd.f32 %v494, %v691
      %v693 = vpop.f32.mrf.mxu0
      %694 = vmatprep.mubr.f32.mxu0 0.0
      %695 = vmatmul.mubr.f32.gmra.mxu0 %v563
      %v696 = vpop.f32.mrf.mxu0
      %v697 = vadd.f32 %v499, %v696
      %v698 = vpop.f32.mrf.mxu0
      %699 = vmatprep.mubr.f32.mxu0 0.0
      %700 = vmatmul.mubr.f32.gmra.mxu0 %v566
      %v701 = vpop.f32.mrf.mxu0
      %v702 = vadd.f32 %v504, %v701
      %v703 = vpop.f32.mrf.mxu0
      %704 = vmatprep.mubr.f32.mxu0 0.0
      %705 = vmatmul.mubr.f32.gmra.mxu0 %v569
      %v706 = vpop.f32.mrf.mxu0
      %v707 = vadd.f32 %v509, %v706
      %v708 = vpop.f32.mrf.mxu0
      %709 = vmatprep.mubr.f32.mxu0 0.0
      %710 = vmatmul.mubr.f32.gmra.mxu0 %v572
      %v711 = vpop.f32.mrf.mxu0
      %v712 = vadd.f32 %v514, %v711
      %v713 = vpop.f32.mrf.mxu0
      %714 = vmatprep.mubr.f32.mxu0 0.0
      %715 = vmatmul.mubr.f32.gmra.mxu0 %v575
      %v716 = vpop.f32.mrf.mxu0
      %v717 = vadd.f32 %v519, %v716
      %v718 = vpop.f32.mrf.mxu0
      %719 = vmatprep.mubr.f32.mxu0 0.0
      %720 = vmatmul.mubr.f32.gmra.mxu0 %v578
      %v721 = vpop.f32.mrf.mxu0
      %v722 = vadd.f32 %v524, %v721
      %v723 = vpop.f32.mrf.mxu0
      %724 = vmatprep.mubr.f32.mxu0 0.0
      %725 = vmatmul.mubr.f32.gmra.mxu0 %v581
      %v726 = vpop.f32.mrf.mxu0
      %v727 = vadd.f32 %v529, %v726
      %v728 = vpop.f32.mrf.mxu0
      %729 = vmatprep.mubr.f32.mxu0 0.0
      %730 = vmatmul.mubr.f32.gmra.mxu0 %v584
      %v731 = vpop.f32.mrf.mxu0
      %v732 = vadd.f32 %v534, %v731
      %v733 = vpop.f32.mrf.mxu0
      %734 = vdwg.mxu0
      %v735 = vld [vmem:[%s4] sm:$0x1]
      %v737 = vlaneseq
      %v738 = vshrl.u32 %v737, 7
      %v739 = vsub.s32 0, %v738
      %v740 = vrot.slane %v735, %v739
      %v742 = vadd.f32 %v657, %v740
      %v743 = vadd.f32 %v662, %v740
      %v744 = vadd.f32 %v667, %v740
      %v745 = vadd.f32 %v672, %v740
      %v746 = vadd.f32 %v677, %v740
      %v747 = vadd.f32 %v682, %v740
      %v748 = vadd.f32 %v687, %v740
      %v749 = vadd.f32 %v692, %v740
      %v750 = vadd.f32 %v697, %v740
      %v751 = vadd.f32 %v702, %v740
      %v752 = vadd.f32 %v707, %v740
      %v753 = vadd.f32 %v712, %v740
      %v754 = vadd.f32 %v717, %v740
      %v755 = vadd.f32 %v722, %v740
      %v756 = vadd.f32 %v727, %v740
      %v757 = vadd.f32 %v732, %v740
      %v758 = vmul.f32 %v742, 0.01
      %v759 = vmul.f32 %v743, 0.01
      %v760 = vmul.f32 %v744, 0.01
      %v761 = vmul.f32 %v745, 0.01
      %v762 = vmul.f32 %v746, 0.01
      %v763 = vmul.f32 %v747, 0.01
      %v764 = vmul.f32 %v748, 0.01
      %v765 = vmul.f32 %v749, 0.01
      %v766 = vmul.f32 %v750, 0.01
      %v767 = vmul.f32 %v751, 0.01
      %v768 = vmul.f32 %v752, 0.01
      %v769 = vmul.f32 %v753, 0.01
      %v770 = vmul.f32 %v754, 0.01
      %v771 = vmul.f32 %v755, 0.01
      %v772 = vmul.f32 %v756, 0.01
      %v773 = vmul.f32 %v757, 0.01
      %v774 = vmax.f32 %v742, %v758
      %v775 = vmax.f32 %v743, %v759
      %v776 = vmax.f32 %v744, %v760
      %v777 = vmax.f32 %v745, %v761
      %v778 = vmax.f32 %v746, %v762
      %v779 = vmax.f32 %v747, %v763
      %v780 = vmax.f32 %v748, %v764
      %v781 = vmax.f32 %v749, %v765
      %v782 = vmax.f32 %v750, %v766
      %v783 = vmax.f32 %v751, %v767
      %v784 = vmax.f32 %v752, %v768
      %v785 = vmax.f32 %v753, %v769
      %v786 = vmax.f32 %v754, %v770
      %v787 = vmax.f32 %v755, %v771
      %v788 = vmax.f32 %v756, %v772
      %v789 = vmax.f32 %v757, %v773
      %v790 = vld [vmem:[%s5] sm:$0xff]
      %v791 = vld [vmem:[%s5 + $0x8] sm:$0xff]
      %v792 = vld [vmem:[%s5 + $0x10] sm:$0x1]
      %v793 = vld [vmem:[%s6] sm:$0x1]
      %v795 = vlaneseq
      %v796 = vshrl.u32 %v795, 7
      %v797 = vsub.s32 0, %v796
      %v798 = vrot.slane %v793, %v797
      %vm800 = vcmask 138240
      %v802 = vsel %vm800, %v774, 0
      %v805 = vsel %vm800, %v775, 0
      %v808 = vsel %vm800, %v776, 0
      %v811 = vsel %vm800, %v777, 0
      %v814 = vsel %vm800, %v778, 0
      %v817 = vsel %vm800, %v779, 0
      %v820 = vsel %vm800, %v780, 0
      %v823 = vsel %vm800, %v781, 0
      %v826 = vsel %vm800, %v782, 0
      %v829 = vsel %vm800, %v783, 0
      %v832 = vsel %vm800, %v784, 0
      %v835 = vsel %vm800, %v785, 0
      %v838 = vsel %vm800, %v786, 0
      %v841 = vsel %vm800, %v787, 0
      %v844 = vsel %vm800, %v788, 0
      %v847 = vsel %vm800, %v789, 0
      %vm849 = vcmask 1040384
      %v851 = vsel %vm849, %v792, 0
      %853 = vmatprep.subr.mxu0 0.0
      %854 = vmatpush1.msra.mxu0 0.0
      %855 = vmatprep.subr.mxu0 0.0
      %856 = vmatpush1.msra.mxu0 0.0
      %857 = vmatprep.subr.mxu0 0.0
      %858 = vmatpush1.msra.mxu0 0.0
      %859 = vmatprep.subr.mxu0 0.0
      %860 = vmatpush1.msra.mxu0 0.0
      %861 = vmatprep.subr.mxu0 0.0
      %862 = vmatpush1.msra.mxu0 0.0
      %863 = vmatprep.subr.mxu0 0.0
      %864 = vmatpush1.msra.mxu0 0.0
      %865 = vmatprep.subr.mxu0 0.0
      %866 = vmatpush1.msra.mxu0 0.0
      %867 = vmatprep.subr.mxu0 0.0
      %868 = vmatpush1.msra.mxu0 0.0
      %869 = vmatprep.subr.mxu0 0.0
      %870 = vmatpush1.msra.mxu0 0.0
      %871 = vmatprep.subr.mxu0 0.0
      %872 = vmatpush1.msra.mxu0 0.0
      %873 = vmatprep.subr.mxu0 0.0
      %874 = vmatpush1.msra.mxu0 0.0
      %875 = vmatprep.subr.mxu0 0.0
      %876 = vmatpush1.msra.mxu0 0.0
      %877 = vmatprep.subr.mxu0 0.0
      %878 = vmatpush1.msra.mxu0 0.0
      %879 = vmatprep.subr.mxu0 0.0
      %880 = vmatpush1.msra.mxu0 %v851
      %881 = vmatprep.subr.mxu0 0.0
      %882 = vmatpush1.msra.mxu0 %v791
      %883 = vmatprep.subr.mxu0 0.0
      %884 = vmatpush1.msra.mxu0 %v790
      %885 = vmatprep.subr.mxu0 0.0
      %886 = vmatpush2.msra.mxu0 0.0
      %887 = vmatprep.subr.mxu0 0.0
      %888 = vmatpush2.msra.mxu0 0.0
      %889 = vmatprep.subr.mxu0 0.0
      %890 = vmatpush2.msra.mxu0 0.0
      %891 = vmatprep.subr.mxu0 0.0
      %892 = vmatpush2.msra.mxu0 0.0
      %893 = vmatprep.subr.mxu0 0.0
      %894 = vmatpush2.msra.mxu0 0.0
      %895 = vmatprep.subr.mxu0 0.0
      %896 = vmatpush2.msra.mxu0 0.0
      %897 = vmatprep.subr.mxu0 0.0
      %898 = vmatpush2.msra.mxu0 0.0
      %899 = vmatprep.subr.mxu0 0.0
      %900 = vmatpush2.msra.mxu0 0.0
      %901 = vmatprep.subr.mxu0 0.0
      %902 = vmatpush2.msra.mxu0 0.0
      %903 = vmatprep.subr.mxu0 0.0
      %904 = vmatpush2.msra.mxu0 0.0
      %905 = vmatprep.subr.mxu0 0.0
      %906 = vmatpush2.msra.mxu0 0.0
      %907 = vmatprep.subr.mxu0 0.0
      %908 = vmatpush2.msra.mxu0 0.0
      %909 = vmatprep.subr.mxu0 0.0
      %910 = vmatpush2.msra.mxu0 0.0
      %911 = vmatprep.subr.mxu0 0.0
      %912 = vmatpush2.msra.mxu0 0.0
      %913 = vmatprep.subr.mxu0 0.0
      %914 = vmatpush2.msra.mxu0 0.0
      %915 = vmatprep.subr.mxu0 0.0
      %916 = vmatpush2.msra.mxu0 0.0
      %917 = vmatprep.mubr.f32.mxu0 0.0
      %918 = vmatmul.mubr.f32.gmra.mxu0 %v802
      %v919 = vpop.f32.mrf.mxu0
      %v920 = vadd.f32 %v798, %v919
      %v921 = vpop.f32.mrf.mxu0
      %922 = vmatprep.mubr.f32.mxu0 0.0
      %923 = vmatmul.mubr.f32.gmra.mxu0 %v805
      %v924 = vpop.f32.mrf.mxu0
      %v925 = vadd.f32 %v798, %v924
      %v926 = vpop.f32.mrf.mxu0
      %927 = vmatprep.mubr.f32.mxu0 0.0
      %928 = vmatmul.mubr.f32.gmra.mxu0 %v808
      %v929 = vpop.f32.mrf.mxu0
      %v930 = vadd.f32 %v798, %v929
      %v931 = vpop.f32.mrf.mxu0
      %932 = vmatprep.mubr.f32.mxu0 0.0
      %933 = vmatmul.mubr.f32.gmra.mxu0 %v811
      %v934 = vpop.f32.mrf.mxu0
      %v935 = vadd.f32 %v798, %v934
      %v936 = vpop.f32.mrf.mxu0
      %937 = vmatprep.mubr.f32.mxu0 0.0
      %938 = vmatmul.mubr.f32.gmra.mxu0 %v814
      %v939 = vpop.f32.mrf.mxu0
      %v940 = vadd.f32 %v798, %v939
      %v941 = vpop.f32.mrf.mxu0
      %942 = vmatprep.mubr.f32.mxu0 0.0
      %943 = vmatmul.mubr.f32.gmra.mxu0 %v817
      %v944 = vpop.f32.mrf.mxu0
      %v945 = vadd.f32 %v798, %v944
      %v946 = vpop.f32.mrf.mxu0
      %947 = vmatprep.mubr.f32.mxu0 0.0
      %948 = vmatmul.mubr.f32.gmra.mxu0 %v820
      %v949 = vpop.f32.mrf.mxu0
      %v950 = vadd.f32 %v798, %v949
      %v951 = vpop.f32.mrf.mxu0
      %952 = vmatprep.mubr.f32.mxu0 0.0
      %953 = vmatmul.mubr.f32.gmra.mxu0 %v823
      %v954 = vpop.f32.mrf.mxu0
      %v955 = vadd.f32 %v798, %v954
      %v956 = vpop.f32.mrf.mxu0
      %957 = vmatprep.mubr.f32.mxu0 0.0
      %958 = vmatmul.mubr.f32.gmra.mxu0 %v826
      %v959 = vpop.f32.mrf.mxu0
      %v960 = vadd.f32 %v798, %v959
      %v961 = vpop.f32.mrf.mxu0
      %962 = vmatprep.mubr.f32.mxu0 0.0
      %963 = vmatmul.mubr.f32.gmra.mxu0 %v829
      %v964 = vpop.f32.mrf.mxu0
      %v965 = vadd.f32 %v798, %v964
      %v966 = vpop.f32.mrf.mxu0
      %967 = vmatprep.mubr.f32.mxu0 0.0
      %968 = vmatmul.mubr.f32.gmra.mxu0 %v832
      %v969 = vpop.f32.mrf.mxu0
      %v970 = vadd.f32 %v798, %v969
      %v971 = vpop.f32.mrf.mxu0
      %972 = vmatprep.mubr.f32.mxu0 0.0
      %973 = vmatmul.mubr.f32.gmra.mxu0 %v835
      %v974 = vpop.f32.mrf.mxu0
      %v975 = vadd.f32 %v798, %v974
      %v976 = vpop.f32.mrf.mxu0
      %977 = vmatprep.mubr.f32.mxu0 0.0
      %978 = vmatmul.mubr.f32.gmra.mxu0 %v838
      %v979 = vpop.f32.mrf.mxu0
      %v980 = vadd.f32 %v798, %v979
      %v981 = vpop.f32.mrf.mxu0
      %982 = vmatprep.mubr.f32.mxu0 0.0
      %983 = vmatmul.mubr.f32.gmra.mxu0 %v841
      %v984 = vpop.f32.mrf.mxu0
      %v985 = vadd.f32 %v798, %v984
      %v986 = vpop.f32.mrf.mxu0
      %987 = vmatprep.mubr.f32.mxu0 0.0
      %988 = vmatmul.mubr.f32.gmra.mxu0 %v844
      %v989 = vpop.f32.mrf.mxu0
      %v990 = vadd.f32 %v798, %v989
      %v991 = vpop.f32.mrf.mxu0
      %992 = vmatprep.mubr.f32.mxu0 0.0
      %993 = vmatmul.mubr.f32.gmra.mxu0 %v847
      %v994 = vpop.f32.mrf.mxu0
      %v995 = vadd.f32 %v798, %v994
      %v996 = vpop.f32.mrf.mxu0
      %997 = vdwg.mxu0
      %998 = vst.msk [vmem:[%s302] sm:$0xff] %vm537, %v920
      %999 = vst.msk [vmem:[%s302 + $0x8] sm:$0xff] %vm537, %v925
      %1000 = vst.msk [vmem:[%s302 + $0x10] sm:$0xff] %vm537, %v930
      %1001 = vst.msk [vmem:[%s302 + $0x18] sm:$0xff] %vm537, %v935
      %1002 = vst.msk [vmem:[%s302 + $0x20] sm:$0xff] %vm537, %v940
      %1003 = vst.msk [vmem:[%s302 + $0x28] sm:$0xff] %vm537, %v945
      %1004 = vst.msk [vmem:[%s302 + $0x30] sm:$0xff] %vm537, %v950
      %1005 = vst.msk [vmem:[%s302 + $0x38] sm:$0xff] %vm537, %v955
      %1006 = vst.msk [vmem:[%s302 + $0x40] sm:$0xff] %vm537, %v960
      %1007 = vst.msk [vmem:[%s302 + $0x48] sm:$0xff] %vm537, %v965
      %1008 = vst.msk [vmem:[%s302 + $0x50] sm:$0xff] %vm537, %v970
      %1009 = vst.msk [vmem:[%s302 + $0x58] sm:$0xff] %vm537, %v975
      %1010 = vst.msk [vmem:[%s302 + $0x60] sm:$0xff] %vm537, %v980
      %1011 = vst.msk [vmem:[%s302 + $0x68] sm:$0xff] %vm537, %v985
      %1012 = vst.msk [vmem:[%s302 + $0x70] sm:$0xff] %vm537, %v990
      %1013 = vst.msk [vmem:[%s302 + $0x78] sm:$0xff] %vm537, %v995
      %s1014 = smul.u32 16, %s18
      %p1015 = scmp.lt.s32.totalorder %s1014, 31
      %s1016 = scalar_select %p1015, %s1014, 31
      %s1017 = smul.addr %s1016, 8
      %s1018 = scalar_lea.vmem %s7, %s1017
      // Predicated region
      $region49: #{forward_model.1} parent=47 // pred_check
        %p1019 = pneg %p193
      $region50: #{forward_model.1} parent=47 // pred_check_branch
        %1021 = sbr.rel (%p1019) target = $region52
      $region51: #{forward_model.1} parent=47 // pred_region
        %s1022 = smul.u32 16, %s18
      $region52: #{forward_model.1} parent=47 // pred_fallthru
        _
    $region48: #{forward_model.1} parent=5 // pred_fallthru
      _
    %p1023 = scmp.le.s32.totalorder 2, %s13
    // Predicated region
    $region53: #{forward_model.1} parent=5 // pred_check
      %p1024 = pneg %p1023
    $region54: #{forward_model.1} parent=5 // pred_check_branch
      %1026 = sbr.rel (%p1024) target = $region56
    $region55: #{forward_model.1} parent=5 // pred_region
      %s1027 = ssub.s32 %s13, 2
      // Predicated region
      $region57: #{forward_model.1} parent=55 // pred_check
        %p1028 = pneg %p199
      $region58: #{forward_model.1} parent=55 // pred_check_branch
        %1030 = sbr.rel (%p1028) target = $region60
      $region59: #{forward_model.1} parent=55 // pred_region
        %s1031 = smul.u32 16, %s19
        %p1032 = scmp.lt.s32.totalorder %s1031, 31
        %s1033 = scalar_select %p1032, %s1031, 31
        %s1034 = smul.addr %s1033, 8
        %s1035 = scalar_lea.vmem %s7, %s1034
      $region60: #{forward_model.1} parent=55 // pred_fallthru
        _
    $region56: #{forward_model.1} parent=5 // pred_fallthru
      _
  $region6: #{forward_model.1} parent=0 // loop_footer
    %s17 = sadd.s32 1, %s13
  $region7: #{forward_model.1} parent=0 // loop_footer_branch
    %12 = sbr.rel target = $region3
  $region8: #{forward_model.1} parent=0 // loop_exit
    _

</llo_original>
